<compile_context>
chip_gen: v6e
topology: v6e:2x2x1
jax: 0.10.0
libtpu: 0.0.40
codegen_flags: <defaults>
</compile_context>

<pallas_src>
import jax
import jax.numpy as jnp
from jax.experimental import pallas as pl
from jax.experimental.pallas import tpu as pltpu

IMG_SIZE = 224.0
ALPHA_2D = 2.0
ALPHA_3D = 10.0
TEMP_W = 0.0005
POSE_W = 0.1
SHAPE_W = 1.0
N_SCALARS = 8  # loss, loss2d, loss3d, loss_temp, reg, camera, pose_t, shape_t


def _fhad_loss_kernel(j2p_ref, j2t_ref, j3p_ref, j3t_ref, theta_ref, beta_ref,
                      out_ref):
    f32 = jnp.float32
    B = j2p_ref.shape[0]
    K = j2p_ref.shape[2]
    S = theta_ref.shape[1]

    # ---- last-timestep per-joint tensors (S dim already sliced to size 1
    # by the BlockSpec index_map; upcast in-kernel so bf16 inputs are fine) --
    p2 = j2p_ref[:, 0, :, :].astype(f32)             # (B, K, 2)
    t2 = j2t_ref[:, 0, :, :].astype(f32)             # (B, K, 2)
    p3 = j3p_ref[:, 0, :, :].astype(f32)             # (B, K, 3)
    t3 = j3t_ref[:, 0, :, :].astype(f32)             # (B, K, 3)

    # ------------------------------ 2D branch ----------------------------
    diff2 = p2 - t2
    sum_abs2 = jnp.sum(jnp.abs(diff2))               # scalar; 1/224 folded below
    eu2 = jnp.sqrt(jnp.sum(diff2 * diff2, axis=2))   # (B, K)

    # ------------------------------ 3D branch ----------------------------
    def center_normalized(x):
        # FHADLoss.normalize_joints_scale: subtract per-channel min, divide
        # every channel by the channel-0 range (true division, same as torch;
        # no zero-range guard — identical inf/NaN behaviour to the original).
        mn = jnp.min(x, axis=1, keepdims=True)                 # (B,1,3)
        mx = jnp.max(x, axis=1, keepdims=True)                 # (B,1,3)
        denom = mx[:, :, 0:1] - mn[:, :, 0:1]                  # (B,1,1)
        n1 = (x - mn) / denom
        # The torch code normalizes a second time before centering; after the
        # first true-division pass the channel mins are exactly 0 and the
        # channel-0 range is exactly 1, so that pass is an exact no-op — only
        # its per-channel max (the max of n1) feeds center_joints_scale.
        centered = n1 - jnp.max(n1, axis=1, keepdims=True)
        return centered, mx - mn                                # raw channel ranges

    cp, scale_p = center_normalized(p3)
    ct, _ = center_normalized(t3)
    diff3 = cp - ct
    sum_sq3 = jnp.sum(diff3 * diff3)                  # scalar (loss_3d, unscaled)
    diff3_s = diff3 * scale_p                         # torch op order for eu3d
    eu3 = jnp.sqrt(jnp.sum(diff3_s * diff3_s, axis=2))  # (B, K)

    # ------------------------ temporal smoothness ------------------------
    def temporal_sq_sum(ref):
        v = ref[...].astype(f32)                      # (B, S, D)
        prev = pltpu.roll(v, shift=1, axis=1)         # prev[s] = v[s-1] (wraps at 0)
        d = prev - v
        s_idx = jax.lax.broadcasted_iota(jnp.int32, d.shape, 1)
        d = jnp.where(s_idx > 0, d, 0.0)              # torch: row-0 diff is exactly 0
        return jnp.sum(d * d)

    pose_sq = temporal_sq_sum(theta_ref)
    shape_sq = temporal_sq_sum(beta_ref)

    # ---------- batch means + constant weights, folded in-kernel ---------
    loss_2d = (ALPHA_2D / (B * IMG_SIZE)) * sum_abs2
    loss_3d = (ALPHA_3D / B) * sum_sq3
    pose_t = pose_sq * (1.0 / (B * S))
    shape_t = shape_sq * (1.0 / (B * S))
    loss_temp = TEMP_W * (POSE_W * pose_t + SHAPE_W * shape_t)
    zero = jnp.float32(0.0)                           # mask / reg / camera terms
    loss = loss_2d + loss_3d + loss_temp

    # ------------- pack everything into one (rows, 128) VMEM tile --------
    rows, lanes = out_ref.shape
    row_idx = jax.lax.broadcasted_iota(jnp.int32, (rows, lanes), 0)
    lane_idx = jax.lax.broadcasted_iota(jnp.int32, (rows, lanes), 1)
    packed = jnp.zeros((rows, lanes), f32)
    for idx, val in enumerate(
            (loss, loss_2d, loss_3d, loss_temp, zero, zero, pose_t, shape_t)):
        packed = jnp.where((row_idx == 0) & (lane_idx == idx), val, packed)
    out_ref[...] = packed                  # one full unmasked vreg store
    out_ref[1:1 + B, 0:K] = eu2            # small in-VMEM slice stores within
    out_ref[1 + B:1 + 2 * B, 0:K] = eu3    # the same (single-DMA) output tile


def fhad_loss_pallas(x2d_pred, x3d_pred, joint_2d_targ, joint_3d_targ,
                     theta, beta, n_kps=21):
    B, S, _ = x2d_pred.shape
    Dt = theta.shape[-1]
    Db = beta.shape[-1]

    # Interleaved flat features -> (B,S,K,C).  When the feature dim is exactly
    # 2*n_kps / 3*n_kps (the FHAD case) the slice is skipped and the reshape is
    # a contiguous minor-dim split (an XLA bitcast, no HBM round trip).
    if x2d_pred.shape[-1] != 2 * n_kps:
        x2d_pred = x2d_pred[..., : 2 * n_kps]
    if x3d_pred.shape[-1] != 3 * n_kps:
        x3d_pred = x3d_pred[..., : 3 * n_kps]
    j2p = x2d_pred.reshape(B, S, n_kps, 2)
    j3p = x3d_pred.reshape(B, S, n_kps, 3)

    rows = 1 + 2 * B
    rows_padded = max(8, ((rows + 7) // 8) * 8)
    last = S - 1

    # Only the last timestep of the joint tensors is DMA'd (index_map picks
    # block S-1 on the size-1 S block dim).  theta/beta need the full window.
    in_specs = [
        pl.BlockSpec((B, 1, n_kps, 2), lambda i: (0, last, 0, 0)),
        pl.BlockSpec((B, 1, n_kps, 2), lambda i: (0, last, 0, 0)),
        pl.BlockSpec((B, 1, n_kps, 3), lambda i: (0, last, 0, 0)),
        pl.BlockSpec((B, 1, n_kps, 3), lambda i: (0, last, 0, 0)),
        pl.BlockSpec((B, S, Dt), lambda i: (0, 0, 0)),
        pl.BlockSpec((B, S, Db), lambda i: (0, 0, 0)),
    ]
    out_specs = pl.BlockSpec((rows_padded, 128), lambda i: (0, 0))

    # True (tiny) cost so XLA overlaps this call with surrounding work.
    isz = lambda a: a.dtype.itemsize
    bytes_in = (B * n_kps * 2 * (isz(j2p) + isz(joint_2d_targ))
                + B * n_kps * 3 * (isz(j3p) + isz(joint_3d_targ))
                + theta.size * isz(theta) + beta.size * isz(beta))
    bytes_out = rows_padded * 128 * 4
    flops = (B * n_kps * (2 * 8 + 3 * 24)          # 2D + 3D branches
             + 2 * B * S * (Dt + Db) * 3           # temporal diffs/squares/sums
             + 256)                                # scalar folding / packing
    cost = pl.CostEstimate(flops=flops,
                           transcendentals=2 * B * n_kps + 2 * B,
                           bytes_accessed=bytes_in + bytes_out)

    out = pl.pallas_call(
        _fhad_loss_kernel,
        out_shape=jax.ShapeDtypeStruct((rows_padded, 128), jnp.float32),
        grid=(1,),
        in_specs=in_specs,
        out_specs=out_specs,
        compiler_params=pltpu.CompilerParams(dimension_semantics=("arbitrary",)),
        cost_estimate=cost,
    )(j2p, joint_2d_targ, j3p, joint_3d_targ, theta, beta)

    # Trivial static-slice unpacking of the single packed output tile.
    scal = out[0, :N_SCALARS]
    eu2d = out[1:1 + B, :n_kps]
    eu3d = out[1 + B:1 + 2 * B, :n_kps]
    loss, loss_2d, loss_3d, loss_temp = scal[0], scal[1], scal[2], scal[3]
    loss_reg, loss_camera = scal[4], scal[5]
    # TODO(synk): the torch module returns per-keypoint python lists built on
    # host from .cpu().numpy(); here the (B, n_kps) device arrays are returned.
    return loss, (loss_2d, loss_3d, loss_temp, loss_reg, loss_camera, eu2d, eu3d)


def fhad_loss_ref(x2d_pred, x3d_pred, joint_2d_targ, joint_3d_targ,
                  theta, beta, n_kps=21):
    """Pure-JAX reference mirroring the PyTorch forward semantics literally."""
    B, S, _ = x2d_pred.shape

    def norm(x):
        mn = jnp.min(x, axis=2, keepdims=True)
        mx = jnp.max(x, axis=2, keepdims=True)
        denom = mx[..., 0:1] - mn[..., 0:1]
        return (x - mn) / denom, mn, mx

    j3p = x3d_pred[:, :, :3 * n_kps].reshape(B, S, n_kps, 3)
    j3t = joint_3d_targ
    n1p, pmin, pmax = norm(j3p)
    n2p, _, maxp = norm(n1p)
    cp = (n2p - maxp)[:, -1]
    n1t, _, _ = norm(j3t)
    n2t, _, maxt = norm(n1t)
    ct = (n2t - maxt)[:, -1]

    j2p = x2d_pred[:, -1, :2 * n_kps].reshape(B, n_kps, 2)
    j2t = joint_2d_targ[:, -1]
    loss_2d = ALPHA_2D * jnp.mean(
        jnp.sum(jnp.abs(j2p / IMG_SIZE - j2t / IMG_SIZE).reshape(B, -1), axis=1))
    diff2d = j2p - j2t
    diff3d = cp - ct
    loss_3d = ALPHA_3D * jnp.mean(jnp.sum((diff3d ** 2).reshape(B, -1), axis=1))
    diff3d_s = diff3d * (pmax - pmin)[:, -1]

    theta_prev = jnp.concatenate([theta[:, 0:1], theta[:, :-1]], axis=1)
    beta_prev = jnp.concatenate([beta[:, 0:1], beta[:, :-1]], axis=1)
    pose_t = jnp.mean(jnp.sum(((theta_prev - theta).reshape(B * S, -1)) ** 2, axis=1))
    shape_t = jnp.mean(jnp.sum(((beta_prev - beta).reshape(B * S, -1)) ** 2, axis=1))
    loss_temp = TEMP_W * (POSE_W * pose_t + SHAPE_W * shape_t)
    loss = loss_2d + loss_3d + loss_temp
    eu2d = jnp.sqrt(jnp.sum(diff2d ** 2, axis=2))
    eu3d = jnp.sqrt(jnp.sum(diff3d_s ** 2, axis=2))
    return loss, loss_2d, loss_3d, loss_temp, eu2d, eu3d


if __name__ == "__main__":
    # FHADLoss has no learnable parameters; only hyper-constants from __init__.
    B, S, n_kps = 2, 8, 21
    Dt, Db = 30, 10   # theta (pose) / beta (shape) feature dims

    key = jax.random.PRNGKey(0)
    k = jax.random.split(key, 6)
    x2d_pred = jax.random.uniform(k[0], (B, S, 2 * n_kps), jnp.float32) * IMG_SIZE
    x3d_pred = jax.random.normal(k[1], (B, S, 3 * n_kps), jnp.float32) * 0.1
    joint_2d_targ = jax.random.uniform(k[2], (B, S, n_kps, 2), jnp.float32) * IMG_SIZE
    joint_3d_targ = jax.random.normal(k[3], (B, S, n_kps, 3), jnp.float32) * 0.1
    theta = jax.random.normal(k[4], (B, S, Dt), jnp.float32)
    beta = jax.random.normal(k[5], (B, S, Db), jnp.float32)

    loss, (l2d, l3d, ltemp, lreg, lcam, eu2d, eu3d) = fhad_loss_pallas(
        x2d_pred, x3d_pred, joint_2d_targ, joint_3d_targ, theta, beta, n_kps)
    jax.block_until_ready(loss)
    jax.block_until_ready(eu2d)
    jax.block_until_ready(eu3d)

    # sanity check against a pure-JAX reference of the same torch semantics
    rloss, rl2d, rl3d, rltemp, reu2d, reu3d = fhad_loss_ref(
        x2d_pred, x3d_pred, joint_2d_targ, joint_3d_targ, theta, beta, n_kps)
    assert jnp.allclose(loss, rloss, rtol=1e-3, atol=1e-3)
    assert jnp.allclose(l2d, rl2d, rtol=1e-3, atol=1e-3)
    assert jnp.allclose(l3d, rl3d, rtol=1e-3, atol=1e-3)
    assert jnp.allclose(ltemp, rltemp, rtol=1e-3, atol=1e-3)
    assert jnp.allclose(eu2d, reu2d, rtol=1e-3, atol=1e-3)
    assert jnp.allclose(eu3d, reu3d, rtol=1e-3, atol=1e-3)
    assert jnp.allclose(lreg, 0.0) and jnp.allclose(lcam, 0.0)

    print("KERNEL_OK")
</pallas_src>

<mosaic_0001>
module attributes {stable_mosaic.version = 11 : i64} {
  func.func @_fhad_loss_kernel(%arg0: i32, %arg1: memref<2x1x21x2xf32, #tpu.memory_space<vmem>>, %arg2: memref<2x1x21x2xf32, #tpu.memory_space<vmem>>, %arg3: memref<2x1x21x3xf32, #tpu.memory_space<vmem>>, %arg4: memref<2x1x21x3xf32, #tpu.memory_space<vmem>>, %arg5: memref<2x8x30xf32, #tpu.memory_space<vmem>>, %arg6: memref<2x8x10xf32, #tpu.memory_space<vmem>>, %arg7: memref<8x128xf32, #tpu.memory_space<vmem>>) attributes {dimension_semantics = [#tpu.dimension_semantics<arbitrary>], iteration_bounds = array<i64: 1>, scalar_prefetch = 0 : i64, scratch_operands = 0 : i64, tpu.core_type = #tpu.core_type<tc>, window_params = [{transform_indices = @transform_0, window_bounds = array<i64: 2, 1, 21, 2>}, {transform_indices = @transform_1, window_bounds = array<i64: 2, 1, 21, 2>}, {transform_indices = @transform_2, window_bounds = array<i64: 2, 1, 21, 3>}, {transform_indices = @transform_3, window_bounds = array<i64: 2, 1, 21, 3>}, {pipeline_mode = #tpu.pipeline_mode<synchronous>, transform_indices = @transform_4, window_bounds = array<i64: 2, 8, 30>}, {pipeline_mode = #tpu.pipeline_mode<synchronous>, transform_indices = @transform_5, window_bounds = array<i64: 2, 8, 10>}, {pipeline_mode = #tpu.pipeline_mode<synchronous>, transform_indices = @transform_6, window_bounds = array<i64: 8, 128>}]} {
    %c0 = arith.constant 0 : index
    %c0_0 = arith.constant 0 : index
    %c0_1 = arith.constant 0 : index
    %c0_2 = arith.constant 0 : index
    %0 = vector.load %arg1[%c0, %c0_0, %c0_1, %c0_2] : memref<2x1x21x2xf32, #tpu.memory_space<vmem>>, vector<2x1x21x2xf32>
    %1 = vector.shape_cast %0 : vector<2x1x21x2xf32> to vector<2x21x2xf32>
    %c0_3 = arith.constant 0 : index
    %c0_4 = arith.constant 0 : index
    %c0_5 = arith.constant 0 : index
    %c0_6 = arith.constant 0 : index
    %2 = vector.load %arg2[%c0_3, %c0_4, %c0_5, %c0_6] : memref<2x1x21x2xf32, #tpu.memory_space<vmem>>, vector<2x1x21x2xf32>
    %3 = vector.shape_cast %2 : vector<2x1x21x2xf32> to vector<2x21x2xf32>
    %c0_7 = arith.constant 0 : index
    %c0_8 = arith.constant 0 : index
    %c0_9 = arith.constant 0 : index
    %c0_10 = arith.constant 0 : index
    %4 = vector.load %arg3[%c0_7, %c0_8, %c0_9, %c0_10] : memref<2x1x21x3xf32, #tpu.memory_space<vmem>>, vector<2x1x21x3xf32>
    %5 = vector.shape_cast %4 : vector<2x1x21x3xf32> to vector<2x21x3xf32>
    %c0_11 = arith.constant 0 : index
    %c0_12 = arith.constant 0 : index
    %c0_13 = arith.constant 0 : index
    %c0_14 = arith.constant 0 : index
    %6 = vector.load %arg4[%c0_11, %c0_12, %c0_13, %c0_14] : memref<2x1x21x3xf32, #tpu.memory_space<vmem>>, vector<2x1x21x3xf32>
    %7 = vector.shape_cast %6 : vector<2x1x21x3xf32> to vector<2x21x3xf32>
    %8 = arith.subf %1, %3 : vector<2x21x2xf32>
    %9 = math.absf %8 : vector<2x21x2xf32>
    %10 = vector.shape_cast %9 : vector<2x21x2xf32> to vector<1x2x21x2xf32>
    %cst = arith.constant dense<0.000000e+00> : vector<1xf32>
    %11 = vector.multi_reduction <add>, %10, %cst [1, 2, 3] : vector<1x2x21x2xf32> to vector<1xf32>
    %12 = vector.shape_cast %11 : vector<1xf32> to vector<1x1x1x1xf32>
    %13 = vector.extract %12[0, 0, 0, 0] : f32 from vector<1x1x1x1xf32>
    %14 = arith.mulf %8, %8 : vector<2x21x2xf32>
    %cst_15 = arith.constant dense<0.000000e+00> : vector<2x21xf32>
    %15 = vector.multi_reduction <add>, %14, %cst_15 [2] : vector<2x21x2xf32> to vector<2x21xf32>
    %16 = math.sqrt %15 : vector<2x21xf32>
    %cst_16 = arith.constant dense<0x7F800000> : vector<2x3xf32>
    %17 = vector.multi_reduction <minimumf>, %5, %cst_16 [1] : vector<2x21x3xf32> to vector<2x3xf32>
    %18 = vector.shape_cast %17 : vector<2x3xf32> to vector<2x1x3xf32>
    %cst_17 = arith.constant dense<0xFF800000> : vector<2x3xf32>
    %19 = vector.multi_reduction <maximumf>, %5, %cst_17 [1] : vector<2x21x3xf32> to vector<2x3xf32>
    %20 = vector.shape_cast %19 : vector<2x3xf32> to vector<2x1x3xf32>
    %21 = vector.extract_strided_slice %20 {offsets = [0, 0, 0], sizes = [2, 1, 1], strides = [1, 1, 1]} : vector<2x1x3xf32> to vector<2x1x1xf32>
    %22 = vector.extract_strided_slice %18 {offsets = [0, 0, 0], sizes = [2, 1, 1], strides = [1, 1, 1]} : vector<2x1x3xf32> to vector<2x1x1xf32>
    %23 = arith.subf %21, %22 : vector<2x1x1xf32>
    %24 = vector.broadcast %18 : vector<2x1x3xf32> to vector<2x21x3xf32>
    %25 = arith.subf %5, %24 : vector<2x21x3xf32>
    %26 = vector.broadcast %23 : vector<2x1x1xf32> to vector<2x21x3xf32>
    %27 = arith.divf %25, %26 : vector<2x21x3xf32>
    %cst_18 = arith.constant dense<0xFF800000> : vector<2x3xf32>
    %28 = vector.multi_reduction <maximumf>, %27, %cst_18 [1] : vector<2x21x3xf32> to vector<2x3xf32>
    %29 = vector.shape_cast %28 : vector<2x3xf32> to vector<2x1x3xf32>
    %30 = vector.broadcast %29 : vector<2x1x3xf32> to vector<2x21x3xf32>
    %31 = arith.subf %27, %30 : vector<2x21x3xf32>
    %32 = arith.subf %20, %18 : vector<2x1x3xf32>
    %cst_19 = arith.constant dense<0x7F800000> : vector<2x3xf32>
    %33 = vector.multi_reduction <minimumf>, %7, %cst_19 [1] : vector<2x21x3xf32> to vector<2x3xf32>
    %34 = vector.shape_cast %33 : vector<2x3xf32> to vector<2x1x3xf32>
    %cst_20 = arith.constant dense<0xFF800000> : vector<2x3xf32>
    %35 = vector.multi_reduction <maximumf>, %7, %cst_20 [1] : vector<2x21x3xf32> to vector<2x3xf32>
    %36 = vector.shape_cast %35 : vector<2x3xf32> to vector<2x1x3xf32>
    %37 = vector.extract_strided_slice %36 {offsets = [0, 0, 0], sizes = [2, 1, 1], strides = [1, 1, 1]} : vector<2x1x3xf32> to vector<2x1x1xf32>
    %38 = vector.extract_strided_slice %34 {offsets = [0, 0, 0], sizes = [2, 1, 1], strides = [1, 1, 1]} : vector<2x1x3xf32> to vector<2x1x1xf32>
    %39 = arith.subf %37, %38 : vector<2x1x1xf32>
    %40 = vector.broadcast %34 : vector<2x1x3xf32> to vector<2x21x3xf32>
    %41 = arith.subf %7, %40 : vector<2x21x3xf32>
    %42 = vector.broadcast %39 : vector<2x1x1xf32> to vector<2x21x3xf32>
    %43 = arith.divf %41, %42 : vector<2x21x3xf32>
    %cst_21 = arith.constant dense<0xFF800000> : vector<2x3xf32>
    %44 = vector.multi_reduction <maximumf>, %43, %cst_21 [1] : vector<2x21x3xf32> to vector<2x3xf32>
    %45 = vector.shape_cast %44 : vector<2x3xf32> to vector<2x1x3xf32>
    %46 = vector.broadcast %45 : vector<2x1x3xf32> to vector<2x21x3xf32>
    %47 = arith.subf %43, %46 : vector<2x21x3xf32>
    %48 = arith.subf %31, %47 : vector<2x21x3xf32>
    %49 = arith.mulf %48, %48 : vector<2x21x3xf32>
    %50 = vector.shape_cast %49 : vector<2x21x3xf32> to vector<1x2x21x3xf32>
    %cst_22 = arith.constant dense<0.000000e+00> : vector<1xf32>
    %51 = vector.multi_reduction <add>, %50, %cst_22 [1, 2, 3] : vector<1x2x21x3xf32> to vector<1xf32>
    %52 = vector.shape_cast %51 : vector<1xf32> to vector<1x1x1x1xf32>
    %53 = vector.extract %52[0, 0, 0, 0] : f32 from vector<1x1x1x1xf32>
    %54 = vector.broadcast %32 : vector<2x1x3xf32> to vector<2x21x3xf32>
    %55 = arith.mulf %48, %54 : vector<2x21x3xf32>
    %56 = arith.mulf %55, %55 : vector<2x21x3xf32>
    %cst_23 = arith.constant dense<0.000000e+00> : vector<2x21xf32>
    %57 = vector.multi_reduction <add>, %56, %cst_23 [2] : vector<2x21x3xf32> to vector<2x21xf32>
    %58 = math.sqrt %57 : vector<2x21xf32>
    %c0_24 = arith.constant 0 : index
    %c0_25 = arith.constant 0 : index
    %c0_26 = arith.constant 0 : index
    %59 = vector.load %arg5[%c0_24, %c0_25, %c0_26] : memref<2x8x30xf32, #tpu.memory_space<vmem>>, vector<2x8x30xf32>
    %c1_i32 = arith.constant 1 : i32
    %60 = tpu.dynamic_rotate %59 by %c1_i32 dim 1 : vector<2x8x30xf32>, i32 -> vector<2x8x30xf32>
    %61 = arith.subf %60, %59 : vector<2x8x30xf32>
    %62 = tpu.iota {dimensions = array<i32: 1>} : vector<2x8x30xi32>
    %c0_i32 = arith.constant 0 : i32
    %63 = vector.broadcast %c0_i32 : i32 to vector<2x8x30xi32>
    %64 = arith.cmpi sgt, %62, %63 : vector<2x8x30xi32>
    %cst_27 = arith.constant 0.000000e+00 : f32
    %65 = vector.broadcast %cst_27 : f32 to vector<2x8x30xf32>
    %66 = arith.select %64, %61, %65 : vector<2x8x30xi1>, vector<2x8x30xf32>
    %67 = arith.mulf %66, %66 : vector<2x8x30xf32>
    %68 = vector.shape_cast %67 : vector<2x8x30xf32> to vector<1x2x8x30xf32>
    %cst_28 = arith.constant dense<0.000000e+00> : vector<1xf32>
    %69 = vector.multi_reduction <add>, %68, %cst_28 [1, 2, 3] : vector<1x2x8x30xf32> to vector<1xf32>
    %70 = vector.shape_cast %69 : vector<1xf32> to vector<1x1x1x1xf32>
    %71 = vector.extract %70[0, 0, 0, 0] : f32 from vector<1x1x1x1xf32>
    %c0_29 = arith.constant 0 : index
    %c0_30 = arith.constant 0 : index
    %c0_31 = arith.constant 0 : index
    %72 = vector.load %arg6[%c0_29, %c0_30, %c0_31] : memref<2x8x10xf32, #tpu.memory_space<vmem>>, vector<2x8x10xf32>
    %c1_i32_32 = arith.constant 1 : i32
    %73 = tpu.dynamic_rotate %72 by %c1_i32_32 dim 1 : vector<2x8x10xf32>, i32 -> vector<2x8x10xf32>
    %74 = arith.subf %73, %72 : vector<2x8x10xf32>
    %75 = tpu.iota {dimensions = array<i32: 1>} : vector<2x8x10xi32>
    %c0_i32_33 = arith.constant 0 : i32
    %76 = vector.broadcast %c0_i32_33 : i32 to vector<2x8x10xi32>
    %77 = arith.cmpi sgt, %75, %76 : vector<2x8x10xi32>
    %cst_34 = arith.constant 0.000000e+00 : f32
    %78 = vector.broadcast %cst_34 : f32 to vector<2x8x10xf32>
    %79 = arith.select %77, %74, %78 : vector<2x8x10xi1>, vector<2x8x10xf32>
    %80 = arith.mulf %79, %79 : vector<2x8x10xf32>
    %81 = vector.shape_cast %80 : vector<2x8x10xf32> to vector<1x2x8x10xf32>
    %cst_35 = arith.constant dense<0.000000e+00> : vector<1xf32>
    %82 = vector.multi_reduction <add>, %81, %cst_35 [1, 2, 3] : vector<1x2x8x10xf32> to vector<1xf32>
    %83 = vector.shape_cast %82 : vector<1xf32> to vector<1x1x1x1xf32>
    %84 = vector.extract %83[0, 0, 0, 0] : f32 from vector<1x1x1x1xf32>
    %cst_36 = arith.constant 0.00446428591 : f32
    %85 = arith.mulf %cst_36, %13 : f32
    %cst_37 = arith.constant 5.000000e+00 : f32
    %86 = arith.mulf %cst_37, %53 : f32
    %cst_38 = arith.constant 6.250000e-02 : f32
    %87 = arith.mulf %71, %cst_38 : f32
    %cst_39 = arith.constant 6.250000e-02 : f32
    %88 = arith.mulf %84, %cst_39 : f32
    %cst_40 = arith.constant 1.000000e-01 : f32
    %89 = arith.mulf %cst_40, %87 : f32
    %cst_41 = arith.constant 1.000000e+00 : f32
    %90 = arith.mulf %cst_41, %88 : f32
    %91 = arith.addf %89, %90 : f32
    %cst_42 = arith.constant 5.000000e-04 : f32
    %92 = arith.mulf %cst_42, %91 : f32
    %93 = arith.addf %85, %86 : f32
    %94 = arith.addf %93, %92 : f32
    %95 = tpu.iota {dimensions = array<i32: 0>} : vector<8x128xi32>
    %96 = tpu.iota {dimensions = array<i32: 1>} : vector<8x128xi32>
    %cst_43 = arith.constant 0.000000e+00 : f32
    %97 = vector.broadcast %cst_43 : f32 to vector<8x128xf32>
    %c0_i32_44 = arith.constant 0 : i32
    %98 = vector.broadcast %c0_i32_44 : i32 to vector<8x128xi32>
    %99 = arith.cmpi eq, %95, %98 : vector<8x128xi32>
    %c0_i32_45 = arith.constant 0 : i32
    %100 = vector.broadcast %c0_i32_45 : i32 to vector<8x128xi32>
    %101 = arith.cmpi eq, %96, %100 : vector<8x128xi32>
    %102 = arith.andi %99, %101 : vector<8x128xi1>
    %103 = vector.broadcast %94 : f32 to vector<8x128xf32>
    %104 = arith.select %102, %103, %97 : vector<8x128xi1>, vector<8x128xf32>
    %c0_i32_46 = arith.constant 0 : i32
    %105 = vector.broadcast %c0_i32_46 : i32 to vector<8x128xi32>
    %106 = arith.cmpi eq, %95, %105 : vector<8x128xi32>
    %c1_i32_47 = arith.constant 1 : i32
    %107 = vector.broadcast %c1_i32_47 : i32 to vector<8x128xi32>
    %108 = arith.cmpi eq, %96, %107 : vector<8x128xi32>
    %109 = arith.andi %106, %108 : vector<8x128xi1>
    %110 = vector.broadcast %85 : f32 to vector<8x128xf32>
    %111 = arith.select %109, %110, %104 : vector<8x128xi1>, vector<8x128xf32>
    %c0_i32_48 = arith.constant 0 : i32
    %112 = vector.broadcast %c0_i32_48 : i32 to vector<8x128xi32>
    %113 = arith.cmpi eq, %95, %112 : vector<8x128xi32>
    %c2_i32 = arith.constant 2 : i32
    %114 = vector.broadcast %c2_i32 : i32 to vector<8x128xi32>
    %115 = arith.cmpi eq, %96, %114 : vector<8x128xi32>
    %116 = arith.andi %113, %115 : vector<8x128xi1>
    %117 = vector.broadcast %86 : f32 to vector<8x128xf32>
    %118 = arith.select %116, %117, %111 : vector<8x128xi1>, vector<8x128xf32>
    %c0_i32_49 = arith.constant 0 : i32
    %119 = vector.broadcast %c0_i32_49 : i32 to vector<8x128xi32>
    %120 = arith.cmpi eq, %95, %119 : vector<8x128xi32>
    %c3_i32 = arith.constant 3 : i32
    %121 = vector.broadcast %c3_i32 : i32 to vector<8x128xi32>
    %122 = arith.cmpi eq, %96, %121 : vector<8x128xi32>
    %123 = arith.andi %120, %122 : vector<8x128xi1>
    %124 = vector.broadcast %92 : f32 to vector<8x128xf32>
    %125 = arith.select %123, %124, %118 : vector<8x128xi1>, vector<8x128xf32>
    %c0_i32_50 = arith.constant 0 : i32
    %126 = vector.broadcast %c0_i32_50 : i32 to vector<8x128xi32>
    %127 = arith.cmpi eq, %95, %126 : vector<8x128xi32>
    %c4_i32 = arith.constant 4 : i32
    %128 = vector.broadcast %c4_i32 : i32 to vector<8x128xi32>
    %129 = arith.cmpi eq, %96, %128 : vector<8x128xi32>
    %130 = arith.andi %127, %129 : vector<8x128xi1>
    %cst_51 = arith.constant 0.000000e+00 : f32
    %131 = vector.broadcast %cst_51 : f32 to vector<8x128xf32>
    %132 = arith.select %130, %131, %125 : vector<8x128xi1>, vector<8x128xf32>
    %c0_i32_52 = arith.constant 0 : i32
    %133 = vector.broadcast %c0_i32_52 : i32 to vector<8x128xi32>
    %134 = arith.cmpi eq, %95, %133 : vector<8x128xi32>
    %c5_i32 = arith.constant 5 : i32
    %135 = vector.broadcast %c5_i32 : i32 to vector<8x128xi32>
    %136 = arith.cmpi eq, %96, %135 : vector<8x128xi32>
    %137 = arith.andi %134, %136 : vector<8x128xi1>
    %cst_53 = arith.constant 0.000000e+00 : f32
    %138 = vector.broadcast %cst_53 : f32 to vector<8x128xf32>
    %139 = arith.select %137, %138, %132 : vector<8x128xi1>, vector<8x128xf32>
    %c0_i32_54 = arith.constant 0 : i32
    %140 = vector.broadcast %c0_i32_54 : i32 to vector<8x128xi32>
    %141 = arith.cmpi eq, %95, %140 : vector<8x128xi32>
    %c6_i32 = arith.constant 6 : i32
    %142 = vector.broadcast %c6_i32 : i32 to vector<8x128xi32>
    %143 = arith.cmpi eq, %96, %142 : vector<8x128xi32>
    %144 = arith.andi %141, %143 : vector<8x128xi1>
    %145 = vector.broadcast %87 : f32 to vector<8x128xf32>
    %146 = arith.select %144, %145, %139 : vector<8x128xi1>, vector<8x128xf32>
    %c0_i32_55 = arith.constant 0 : i32
    %147 = vector.broadcast %c0_i32_55 : i32 to vector<8x128xi32>
    %148 = arith.cmpi eq, %95, %147 : vector<8x128xi32>
    %c7_i32 = arith.constant 7 : i32
    %149 = vector.broadcast %c7_i32 : i32 to vector<8x128xi32>
    %150 = arith.cmpi eq, %96, %149 : vector<8x128xi32>
    %151 = arith.andi %148, %150 : vector<8x128xi1>
    %152 = vector.broadcast %88 : f32 to vector<8x128xf32>
    %153 = arith.select %151, %152, %146 : vector<8x128xi1>, vector<8x128xf32>
    %c0_56 = arith.constant 0 : index
    %c0_57 = arith.constant 0 : index
    %154 = vector.load %arg7[%c0_56, %c0_57] : memref<8x128xf32, #tpu.memory_space<vmem>>, vector<8x128xf32>
    tpu.vector_store %arg7[%c0_56, %c0_57], %153 {strides = array<i32>} : memref<8x128xf32, #tpu.memory_space<vmem>>, vector<8x128xf32>,
    %c1 = arith.constant 1 : index
    %c0_58 = arith.constant 0 : index
    %155 = vector.load %arg7[%c1, %c0_58] : memref<8x128xf32, #tpu.memory_space<vmem>>, vector<2x21xf32>
    tpu.vector_store %arg7[%c1, %c0_58], %16 {strides = array<i32>} : memref<8x128xf32, #tpu.memory_space<vmem>>, vector<2x21xf32>,
    %c3 = arith.constant 3 : index
    %c0_59 = arith.constant 0 : index
    %156 = vector.load %arg7[%c3, %c0_59] : memref<8x128xf32, #tpu.memory_space<vmem>>, vector<2x21xf32>
    tpu.vector_store %arg7[%c3, %c0_59], %58 {strides = array<i32>} : memref<8x128xf32, #tpu.memory_space<vmem>>, vector<2x21xf32>,
    return
  }
  func.func @transform_0(%arg0: i32) -> (i32, i32, i32, i32) {
    %c0_i32 = arith.constant 0 : i32
    %c7_i32 = arith.constant 7 : i32
    %c0_i32_0 = arith.constant 0 : i32
    %c0_i32_1 = arith.constant 0 : i32
    %c0_i32_2 = arith.constant 0 : i32
    return %c0_i32, %c7_i32, %c0_i32_0, %c0_i32_1 : i32, i32, i32, i32
  }
  func.func @transform_1(%arg0: i32) -> (i32, i32, i32, i32) {
    %c0_i32 = arith.constant 0 : i32
    %c7_i32 = arith.constant 7 : i32
    %c0_i32_0 = arith.constant 0 : i32
    %c0_i32_1 = arith.constant 0 : i32
    %c0_i32_2 = arith.constant 0 : i32
    return %c0_i32, %c7_i32, %c0_i32_0, %c0_i32_1 : i32, i32, i32, i32
  }
  func.func @transform_2(%arg0: i32) -> (i32, i32, i32, i32) {
    %c0_i32 = arith.constant 0 : i32
    %c7_i32 = arith.constant 7 : i32
    %c0_i32_0 = arith.constant 0 : i32
    %c0_i32_1 = arith.constant 0 : i32
    %c0_i32_2 = arith.constant 0 : i32
    return %c0_i32, %c7_i32, %c0_i32_0, %c0_i32_1 : i32, i32, i32, i32
  }
  func.func @transform_3(%arg0: i32) -> (i32, i32, i32, i32) {
    %c0_i32 = arith.constant 0 : i32
    %c7_i32 = arith.constant 7 : i32
    %c0_i32_0 = arith.constant 0 : i32
    %c0_i32_1 = arith.constant 0 : i32
    %c0_i32_2 = arith.constant 0 : i32
    return %c0_i32, %c7_i32, %c0_i32_0, %c0_i32_1 : i32, i32, i32, i32
  }
  func.func @transform_4(%arg0: i32) -> (i32, i32, i32) {
    %c0_i32 = arith.constant 0 : i32
    %c0_i32_0 = arith.constant 0 : i32
    %c0_i32_1 = arith.constant 0 : i32
    %c0_i32_2 = arith.constant 0 : i32
    return %c0_i32, %c0_i32_0, %c0_i32_1 : i32, i32, i32
  }
  func.func @transform_5(%arg0: i32) -> (i32, i32, i32) {
    %c0_i32 = arith.constant 0 : i32
    %c0_i32_0 = arith.constant 0 : i32
    %c0_i32_1 = arith.constant 0 : i32
    %c0_i32_2 = arith.constant 0 : i32
    return %c0_i32, %c0_i32_0, %c0_i32_1 : i32, i32, i32
  }
  func.func @transform_6(%arg0: i32) -> (i32, i32) {
    %c0_i32 = arith.constant 0 : i32
    %c0_i32_0 = arith.constant 0 : i32
    %c0_i32_1 = arith.constant 0 : i32
    return %c0_i32, %c0_i32_0 : i32, i32
  }
}

</mosaic_0001>

<llo_original>
// kernel: tpu_custom_call.1
$region0: #{tpu_custom_call.1}
  #allocation0 [shape = 'u32[]', space=smem, size = 0x4, offset = 0x4, fixed_abs, tag = 'smem constant byte address 0x4 - core index']
  #allocation1 [shape = 'u32[144,128]{1,0:T(1,128)}', space=vmem, size = 0x12000, scoped, tag = 'internal scratch']
  %s0 = inlined_call_operand.vmem [shape: f32[2,8,21,2], index: 0, kind: input, shape index: {}]
  %s1 = inlined_call_operand.vmem [shape: f32[2,8,21,2], index: 1, kind: input, shape index: {}]
  %s2 = inlined_call_operand.vmem [shape: f32[2,8,21,3], index: 2, kind: input, shape index: {}]
  %s3 = inlined_call_operand.vmem [shape: f32[2,8,21,3], index: 3, kind: input, shape index: {}]
  %s4 = inlined_call_operand.vmem [shape: f32[2,8,30], index: 4, kind: input, shape index: {}]
  %s5 = inlined_call_operand.vmem [shape: f32[2,8,10], index: 5, kind: input, shape index: {}]
  %s6 = inlined_call_operand.hbm [shape: f32[8,128], index: 6, kind: output, shape index: {}]
  %s7 = sld [smem:[#allocation0]]
  $region186: #{tpu_custom_call.1} parent=0
    _
  %s9 = ssub.s32 1, %s7
  %s10 = scalar_select 0, %s9, %s7
  $region1: #{tpu_custom_call.1} parent=0
    #allocation2 [shape = 'u8[24576]{0}', space=vmem, size = 0x6000, scoped, tag = 'input window, operand 0, single buffered']
    #allocation3 [shape = 'u8[24576]{0}', space=vmem, size = 0x6000, scoped, tag = 'input window, operand 1, single buffered']
    #allocation4 [shape = 'u8[24576]{0}', space=vmem, size = 0x6000, scoped, tag = 'input window, operand 2, single buffered']
    #allocation5 [shape = 'u8[24576]{0}', space=vmem, size = 0x6000, scoped, tag = 'input window, operand 3, single buffered']
    #allocation6 [shape = 'u8[4096]{0}', space=vmem, size = 0x1000, scoped, tag = 'output window, operand 0, single buffered']
    #allocation7 [shape = 's32[1]{0}', space=sflag, size = 0x4, scoped, tag = 'scoped memory for tpu_custom_call.1']
    %11 = vsyncpa [#allocation7], 0
    // Predicated region
    $region2: #{tpu_custom_call.1} parent=1 // pred_check
      _
    $region3: #{tpu_custom_call.1} parent=1 // pred_check_branch
      %13 = sbr.rel (0) target = $region5
    $region4: #{tpu_custom_call.1} parent=1 // pred_region
      %s14 = scalar_lea.vmem %s0, 168
      // Predicated region
      $region6: #{tpu_custom_call.1} parent=4 // pred_check
        _
      $region7: #{tpu_custom_call.1} parent=4 // pred_check_branch
        %16 = sbr.rel (0) target = $region9
      $region8: #{tpu_custom_call.1} parent=4 // pred_region
        // Predicated region
        $region10: #{tpu_custom_call.1} parent=8 // pred_check
          _
        $region11: #{tpu_custom_call.1} parent=8 // pred_check_branch
          %18 = sbr.rel (0) target = $region13
        $region12: #{tpu_custom_call.1} parent=8 // pred_region
          // Predicated region
          $region25: #{tpu_custom_call.1} parent=12 // pred_check
            _
          $region26: #{tpu_custom_call.1} parent=12 // pred_check_branch
            %44 = sbr.rel (0) target = $region28
          $region27: #{tpu_custom_call.1} parent=12 // pred_region
            loop: start=0, step=1, limit=1
            $region29: #{tpu_custom_call.1} parent=27 // loop_pre_header
              _
            $region30: #{tpu_custom_call.1} parent=27 // loop_header
              %s46 = sphi 0, %s50
              %p47 = scmp.ge.s32.totalorder %s46, 1
              %s51 = sphi %s14, %s14
              %s52 = sphi [#allocation2], [#allocation2]
            $region31: #{tpu_custom_call.1} parent=27 // loop_header_branch
              %49 = sbr.rel (%p47) target = $region35
            $region32: #{tpu_custom_call.1} parent=27 // loop_body
              %v53 = vld [vmem:[%s51] sm:$0xff]
              %54 = vst [vmem:[%s52] sm:$0xff] %v53
              %v55 = vld [vmem:[%s51 + $0x8] sm:$0xff]
              %56 = vst [vmem:[%s52 + $0x8] sm:$0xff] %v55
              %v57 = vld [vmem:[%s51 + $0x10] sm:$0xff]
              %58 = vst [vmem:[%s52 + $0x10] sm:$0xff] %v57
              %v59 = vld [vmem:[%s51 + $0xc0] sm:$0xff]
              %60 = vst [vmem:[%s52 + $0x18] sm:$0xff] %v59
              %v61 = vld [vmem:[%s51 + $0xc8] sm:$0xff]
              %62 = vst [vmem:[%s52 + $0x20] sm:$0xff] %v61
              %v63 = vld [vmem:[%s51 + $0xd0] sm:$0xff]
              %64 = vst [vmem:[%s52 + $0x28] sm:$0xff] %v63
            $region33: #{tpu_custom_call.1} parent=27 // loop_footer
              %s50 = sadd.s32 1, %s46
            $region34: #{tpu_custom_call.1} parent=27 // loop_footer_branch
              %45 = sbr.rel target = $region30
            $region35: #{tpu_custom_call.1} parent=27 // loop_exit
              _
          $region28: #{tpu_custom_call.1} parent=12 // pred_fallthru
            _
          // Predicated region
          $region36: #{tpu_custom_call.1} parent=12 // pred_check
            _
          $region37: #{tpu_custom_call.1} parent=12 // pred_check_branch
            %66 = sbr.rel target = $region39
          $region38: #{tpu_custom_call.1} parent=12 // pred_region
            _
          $region39: #{tpu_custom_call.1} parent=12 // pred_fallthru
            _
        $region13: #{tpu_custom_call.1} parent=8 // pred_fallthru
          _
        // Predicated region
        $region14: #{tpu_custom_call.1} parent=8 // pred_check
          _
        $region15: #{tpu_custom_call.1} parent=8 // pred_check_branch
          %20 = sbr.rel target = $region17
        $region16: #{tpu_custom_call.1} parent=8 // pred_region
          %s22 = ssub.s32 256, 1
          loop: start=0, step=1, limit=1
          $region18: #{tpu_custom_call.1} parent=16 // loop_pre_header
            _
          $region19: #{tpu_custom_call.1} parent=16 // loop_header
            %s24 = sphi 0, %s28
            %p25 = scmp.ge.s32.totalorder %s24, 1
            %s29 = sphi %s14, %s14
            %s30 = sphi [#allocation2], [#allocation2]
          $region20: #{tpu_custom_call.1} parent=16 // loop_header_branch
            %27 = sbr.rel (%p25) target = $region24
          $region21: #{tpu_custom_call.1} parent=16 // loop_body
            %v31 = vld [vmem:[%s29] sm:%s22]
            %32 = vst [vmem:[%s30] sm:%s22] %v31
            %v33 = vld [vmem:[%s29 + $0x8] sm:%s22]
            %34 = vst [vmem:[%s30 + $0x8] sm:%s22] %v33
            %v35 = vld [vmem:[%s29 + $0x10] sm:%s22]
            %36 = vst [vmem:[%s30 + $0x10] sm:%s22] %v35
            %v37 = vld [vmem:[%s29 + $0xc0] sm:%s22]
            %38 = vst [vmem:[%s30 + $0x18] sm:%s22] %v37
            %v39 = vld [vmem:[%s29 + $0xc8] sm:%s22]
            %40 = vst [vmem:[%s30 + $0x20] sm:%s22] %v39
            %v41 = vld [vmem:[%s29 + $0xd0] sm:%s22]
            %42 = vst [vmem:[%s30 + $0x28] sm:%s22] %v41
          $region22: #{tpu_custom_call.1} parent=16 // loop_footer
            %s28 = sadd.s32 1, %s24
          $region23: #{tpu_custom_call.1} parent=16 // loop_footer_branch
            %23 = sbr.rel target = $region19
          $region24: #{tpu_custom_call.1} parent=16 // loop_exit
            _
        $region17: #{tpu_custom_call.1} parent=8 // pred_fallthru
          _
      $region9: #{tpu_custom_call.1} parent=4 // pred_fallthru
        _
      %67 = vnop
    $region5: #{tpu_custom_call.1} parent=1 // pred_fallthru
      _
    // Predicated region
    $region40: #{tpu_custom_call.1} parent=1 // pred_check
      _
    $region41: #{tpu_custom_call.1} parent=1 // pred_check_branch
      %69 = sbr.rel (0) target = $region43
    $region42: #{tpu_custom_call.1} parent=1 // pred_region
      %s70 = scalar_lea.vmem %s1, 168
      // Predicated region
      $region44: #{tpu_custom_call.1} parent=42 // pred_check
        _
      $region45: #{tpu_custom_call.1} parent=42 // pred_check_branch
        %72 = sbr.rel (0) target = $region47
      $region46: #{tpu_custom_call.1} parent=42 // pred_region
        // Predicated region
        $region48: #{tpu_custom_call.1} parent=46 // pred_check
          _
        $region49: #{tpu_custom_call.1} parent=46 // pred_check_branch
          %74 = sbr.rel (0) target = $region51
        $region50: #{tpu_custom_call.1} parent=46 // pred_region
          // Predicated region
          $region63: #{tpu_custom_call.1} parent=50 // pred_check
            _
          $region64: #{tpu_custom_call.1} parent=50 // pred_check_branch
            %100 = sbr.rel (0) target = $region66
          $region65: #{tpu_custom_call.1} parent=50 // pred_region
            loop: start=0, step=1, limit=1
            $region67: #{tpu_custom_call.1} parent=65 // loop_pre_header
              _
            $region68: #{tpu_custom_call.1} parent=65 // loop_header
              %s102 = sphi 0, %s106
              %p103 = scmp.ge.s32.totalorder %s102, 1
              %s107 = sphi %s70, %s70
              %s108 = sphi [#allocation3], [#allocation3]
            $region69: #{tpu_custom_call.1} parent=65 // loop_header_branch
              %105 = sbr.rel (%p103) target = $region73
            $region70: #{tpu_custom_call.1} parent=65 // loop_body
              %v109 = vld [vmem:[%s107] sm:$0xff]
              %110 = vst [vmem:[%s108] sm:$0xff] %v109
              %v111 = vld [vmem:[%s107 + $0x8] sm:$0xff]
              %112 = vst [vmem:[%s108 + $0x8] sm:$0xff] %v111
              %v113 = vld [vmem:[%s107 + $0x10] sm:$0xff]
              %114 = vst [vmem:[%s108 + $0x10] sm:$0xff] %v113
              %v115 = vld [vmem:[%s107 + $0xc0] sm:$0xff]
              %116 = vst [vmem:[%s108 + $0x18] sm:$0xff] %v115
              %v117 = vld [vmem:[%s107 + $0xc8] sm:$0xff]
              %118 = vst [vmem:[%s108 + $0x20] sm:$0xff] %v117
              %v119 = vld [vmem:[%s107 + $0xd0] sm:$0xff]
              %120 = vst [vmem:[%s108 + $0x28] sm:$0xff] %v119
            $region71: #{tpu_custom_call.1} parent=65 // loop_footer
              %s106 = sadd.s32 1, %s102
            $region72: #{tpu_custom_call.1} parent=65 // loop_footer_branch
              %101 = sbr.rel target = $region68
            $region73: #{tpu_custom_call.1} parent=65 // loop_exit
              _
          $region66: #{tpu_custom_call.1} parent=50 // pred_fallthru
            _
          // Predicated region
          $region74: #{tpu_custom_call.1} parent=50 // pred_check
            _
          $region75: #{tpu_custom_call.1} parent=50 // pred_check_branch
            %122 = sbr.rel target = $region77
          $region76: #{tpu_custom_call.1} parent=50 // pred_region
            _
          $region77: #{tpu_custom_call.1} parent=50 // pred_fallthru
            _
        $region51: #{tpu_custom_call.1} parent=46 // pred_fallthru
          _
        // Predicated region
        $region52: #{tpu_custom_call.1} parent=46 // pred_check
          _
        $region53: #{tpu_custom_call.1} parent=46 // pred_check_branch
          %76 = sbr.rel target = $region55
        $region54: #{tpu_custom_call.1} parent=46 // pred_region
          %s78 = ssub.s32 256, 1
          loop: start=0, step=1, limit=1
          $region56: #{tpu_custom_call.1} parent=54 // loop_pre_header
            _
          $region57: #{tpu_custom_call.1} parent=54 // loop_header
            %s80 = sphi 0, %s84
            %p81 = scmp.ge.s32.totalorder %s80, 1
            %s85 = sphi %s70, %s70
            %s86 = sphi [#allocation3], [#allocation3]
          $region58: #{tpu_custom_call.1} parent=54 // loop_header_branch
            %83 = sbr.rel (%p81) target = $region62
          $region59: #{tpu_custom_call.1} parent=54 // loop_body
            %v87 = vld [vmem:[%s85] sm:%s78]
            %88 = vst [vmem:[%s86] sm:%s78] %v87
            %v89 = vld [vmem:[%s85 + $0x8] sm:%s78]
            %90 = vst [vmem:[%s86 + $0x8] sm:%s78] %v89
            %v91 = vld [vmem:[%s85 + $0x10] sm:%s78]
            %92 = vst [vmem:[%s86 + $0x10] sm:%s78] %v91
            %v93 = vld [vmem:[%s85 + $0xc0] sm:%s78]
            %94 = vst [vmem:[%s86 + $0x18] sm:%s78] %v93
            %v95 = vld [vmem:[%s85 + $0xc8] sm:%s78]
            %96 = vst [vmem:[%s86 + $0x20] sm:%s78] %v95
            %v97 = vld [vmem:[%s85 + $0xd0] sm:%s78]
            %98 = vst [vmem:[%s86 + $0x28] sm:%s78] %v97
          $region60: #{tpu_custom_call.1} parent=54 // loop_footer
            %s84 = sadd.s32 1, %s80
          $region61: #{tpu_custom_call.1} parent=54 // loop_footer_branch
            %79 = sbr.rel target = $region57
          $region62: #{tpu_custom_call.1} parent=54 // loop_exit
            _
        $region55: #{tpu_custom_call.1} parent=46 // pred_fallthru
          _
      $region47: #{tpu_custom_call.1} parent=42 // pred_fallthru
        _
      %123 = vnop
    $region43: #{tpu_custom_call.1} parent=1 // pred_fallthru
      _
    // Predicated region
    $region78: #{tpu_custom_call.1} parent=1 // pred_check
      _
    $region79: #{tpu_custom_call.1} parent=1 // pred_check_branch
      %125 = sbr.rel (0) target = $region81
    $region80: #{tpu_custom_call.1} parent=1 // pred_region
      %s126 = scalar_lea.vmem %s2, 168
      // Predicated region
      $region82: #{tpu_custom_call.1} parent=80 // pred_check
        _
      $region83: #{tpu_custom_call.1} parent=80 // pred_check_branch
        %128 = sbr.rel (0) target = $region85
      $region84: #{tpu_custom_call.1} parent=80 // pred_region
        // Predicated region
        $region86: #{tpu_custom_call.1} parent=84 // pred_check
          _
        $region87: #{tpu_custom_call.1} parent=84 // pred_check_branch
          %130 = sbr.rel (0) target = $region89
        $region88: #{tpu_custom_call.1} parent=84 // pred_region
          // Predicated region
          $region101: #{tpu_custom_call.1} parent=88 // pred_check
            _
          $region102: #{tpu_custom_call.1} parent=88 // pred_check_branch
            %156 = sbr.rel (0) target = $region104
          $region103: #{tpu_custom_call.1} parent=88 // pred_region
            loop: start=0, step=1, limit=1
            $region105: #{tpu_custom_call.1} parent=103 // loop_pre_header
              _
            $region106: #{tpu_custom_call.1} parent=103 // loop_header
              %s158 = sphi 0, %s162
              %p159 = scmp.ge.s32.totalorder %s158, 1
              %s163 = sphi %s126, %s126
              %s164 = sphi [#allocation4], [#allocation4]
            $region107: #{tpu_custom_call.1} parent=103 // loop_header_branch
              %161 = sbr.rel (%p159) target = $region111
            $region108: #{tpu_custom_call.1} parent=103 // loop_body
              %v165 = vld [vmem:[%s163] sm:$0xff]
              %166 = vst [vmem:[%s164] sm:$0xff] %v165
              %v167 = vld [vmem:[%s163 + $0x8] sm:$0xff]
              %168 = vst [vmem:[%s164 + $0x8] sm:$0xff] %v167
              %v169 = vld [vmem:[%s163 + $0x10] sm:$0xff]
              %170 = vst [vmem:[%s164 + $0x10] sm:$0xff] %v169
              %v171 = vld [vmem:[%s163 + $0xc0] sm:$0xff]
              %172 = vst [vmem:[%s164 + $0x18] sm:$0xff] %v171
              %v173 = vld [vmem:[%s163 + $0xc8] sm:$0xff]
              %174 = vst [vmem:[%s164 + $0x20] sm:$0xff] %v173
              %v175 = vld [vmem:[%s163 + $0xd0] sm:$0xff]
              %176 = vst [vmem:[%s164 + $0x28] sm:$0xff] %v175
            $region109: #{tpu_custom_call.1} parent=103 // loop_footer
              %s162 = sadd.s32 1, %s158
            $region110: #{tpu_custom_call.1} parent=103 // loop_footer_branch
              %157 = sbr.rel target = $region106
            $region111: #{tpu_custom_call.1} parent=103 // loop_exit
              _
          $region104: #{tpu_custom_call.1} parent=88 // pred_fallthru
            _
          // Predicated region
          $region112: #{tpu_custom_call.1} parent=88 // pred_check
            _
          $region113: #{tpu_custom_call.1} parent=88 // pred_check_branch
            %178 = sbr.rel target = $region115
          $region114: #{tpu_custom_call.1} parent=88 // pred_region
            _
          $region115: #{tpu_custom_call.1} parent=88 // pred_fallthru
            _
        $region89: #{tpu_custom_call.1} parent=84 // pred_fallthru
          _
        // Predicated region
        $region90: #{tpu_custom_call.1} parent=84 // pred_check
          _
        $region91: #{tpu_custom_call.1} parent=84 // pred_check_branch
          %132 = sbr.rel target = $region93
        $region92: #{tpu_custom_call.1} parent=84 // pred_region
          %s134 = ssub.s32 256, 1
          loop: start=0, step=1, limit=1
          $region94: #{tpu_custom_call.1} parent=92 // loop_pre_header
            _
          $region95: #{tpu_custom_call.1} parent=92 // loop_header
            %s136 = sphi 0, %s140
            %p137 = scmp.ge.s32.totalorder %s136, 1
            %s141 = sphi %s126, %s126
            %s142 = sphi [#allocation4], [#allocation4]
          $region96: #{tpu_custom_call.1} parent=92 // loop_header_branch
            %139 = sbr.rel (%p137) target = $region100
          $region97: #{tpu_custom_call.1} parent=92 // loop_body
            %v143 = vld [vmem:[%s141] sm:%s134]
            %144 = vst [vmem:[%s142] sm:%s134] %v143
            %v145 = vld [vmem:[%s141 + $0x8] sm:%s134]
            %146 = vst [vmem:[%s142 + $0x8] sm:%s134] %v145
            %v147 = vld [vmem:[%s141 + $0x10] sm:%s134]
            %148 = vst [vmem:[%s142 + $0x10] sm:%s134] %v147
            %v149 = vld [vmem:[%s141 + $0xc0] sm:%s134]
            %150 = vst [vmem:[%s142 + $0x18] sm:%s134] %v149
            %v151 = vld [vmem:[%s141 + $0xc8] sm:%s134]
            %152 = vst [vmem:[%s142 + $0x20] sm:%s134] %v151
            %v153 = vld [vmem:[%s141 + $0xd0] sm:%s134]
            %154 = vst [vmem:[%s142 + $0x28] sm:%s134] %v153
          $region98: #{tpu_custom_call.1} parent=92 // loop_footer
            %s140 = sadd.s32 1, %s136
          $region99: #{tpu_custom_call.1} parent=92 // loop_footer_branch
            %135 = sbr.rel target = $region95
          $region100: #{tpu_custom_call.1} parent=92 // loop_exit
            _
        $region93: #{tpu_custom_call.1} parent=84 // pred_fallthru
          _
      $region85: #{tpu_custom_call.1} parent=80 // pred_fallthru
        _
      %179 = vnop
    $region81: #{tpu_custom_call.1} parent=1 // pred_fallthru
      _
    // Predicated region
    $region116: #{tpu_custom_call.1} parent=1 // pred_check
      _
    $region117: #{tpu_custom_call.1} parent=1 // pred_check_branch
      %181 = sbr.rel (0) target = $region119
    $region118: #{tpu_custom_call.1} parent=1 // pred_region
      %s182 = scalar_lea.vmem %s3, 168
      // Predicated region
      $region120: #{tpu_custom_call.1} parent=118 // pred_check
        _
      $region121: #{tpu_custom_call.1} parent=118 // pred_check_branch
        %184 = sbr.rel (0) target = $region123
      $region122: #{tpu_custom_call.1} parent=118 // pred_region
        // Predicated region
        $region124: #{tpu_custom_call.1} parent=122 // pred_check
          _
        $region125: #{tpu_custom_call.1} parent=122 // pred_check_branch
          %186 = sbr.rel (0) target = $region127
        $region126: #{tpu_custom_call.1} parent=122 // pred_region
          // Predicated region
          $region139: #{tpu_custom_call.1} parent=126 // pred_check
            _
          $region140: #{tpu_custom_call.1} parent=126 // pred_check_branch
            %212 = sbr.rel (0) target = $region142
          $region141: #{tpu_custom_call.1} parent=126 // pred_region
            loop: start=0, step=1, limit=1
            $region143: #{tpu_custom_call.1} parent=141 // loop_pre_header
              _
            $region144: #{tpu_custom_call.1} parent=141 // loop_header
              %s214 = sphi 0, %s218
              %p215 = scmp.ge.s32.totalorder %s214, 1
              %s219 = sphi %s182, %s182
              %s220 = sphi [#allocation5], [#allocation5]
            $region145: #{tpu_custom_call.1} parent=141 // loop_header_branch
              %217 = sbr.rel (%p215) target = $region149
            $region146: #{tpu_custom_call.1} parent=141 // loop_body
              %v221 = vld [vmem:[%s219] sm:$0xff]
              %222 = vst [vmem:[%s220] sm:$0xff] %v221
              %v223 = vld [vmem:[%s219 + $0x8] sm:$0xff]
              %224 = vst [vmem:[%s220 + $0x8] sm:$0xff] %v223
              %v225 = vld [vmem:[%s219 + $0x10] sm:$0xff]
              %226 = vst [vmem:[%s220 + $0x10] sm:$0xff] %v225
              %v227 = vld [vmem:[%s219 + $0xc0] sm:$0xff]
              %228 = vst [vmem:[%s220 + $0x18] sm:$0xff] %v227
              %v229 = vld [vmem:[%s219 + $0xc8] sm:$0xff]
              %230 = vst [vmem:[%s220 + $0x20] sm:$0xff] %v229
              %v231 = vld [vmem:[%s219 + $0xd0] sm:$0xff]
              %232 = vst [vmem:[%s220 + $0x28] sm:$0xff] %v231
            $region147: #{tpu_custom_call.1} parent=141 // loop_footer
              %s218 = sadd.s32 1, %s214
            $region148: #{tpu_custom_call.1} parent=141 // loop_footer_branch
              %213 = sbr.rel target = $region144
            $region149: #{tpu_custom_call.1} parent=141 // loop_exit
              _
          $region142: #{tpu_custom_call.1} parent=126 // pred_fallthru
            _
          // Predicated region
          $region150: #{tpu_custom_call.1} parent=126 // pred_check
            _
          $region151: #{tpu_custom_call.1} parent=126 // pred_check_branch
            %234 = sbr.rel target = $region153
          $region152: #{tpu_custom_call.1} parent=126 // pred_region
            _
          $region153: #{tpu_custom_call.1} parent=126 // pred_fallthru
            _
        $region127: #{tpu_custom_call.1} parent=122 // pred_fallthru
          _
        // Predicated region
        $region128: #{tpu_custom_call.1} parent=122 // pred_check
          _
        $region129: #{tpu_custom_call.1} parent=122 // pred_check_branch
          %188 = sbr.rel target = $region131
        $region130: #{tpu_custom_call.1} parent=122 // pred_region
          %s190 = ssub.s32 256, 1
          loop: start=0, step=1, limit=1
          $region132: #{tpu_custom_call.1} parent=130 // loop_pre_header
            _
          $region133: #{tpu_custom_call.1} parent=130 // loop_header
            %s192 = sphi 0, %s196
            %p193 = scmp.ge.s32.totalorder %s192, 1
            %s197 = sphi %s182, %s182
            %s198 = sphi [#allocation5], [#allocation5]
          $region134: #{tpu_custom_call.1} parent=130 // loop_header_branch
            %195 = sbr.rel (%p193) target = $region138
          $region135: #{tpu_custom_call.1} parent=130 // loop_body
            %v199 = vld [vmem:[%s197] sm:%s190]
            %200 = vst [vmem:[%s198] sm:%s190] %v199
            %v201 = vld [vmem:[%s197 + $0x8] sm:%s190]
            %202 = vst [vmem:[%s198 + $0x8] sm:%s190] %v201
            %v203 = vld [vmem:[%s197 + $0x10] sm:%s190]
            %204 = vst [vmem:[%s198 + $0x10] sm:%s190] %v203
            %v205 = vld [vmem:[%s197 + $0xc0] sm:%s190]
            %206 = vst [vmem:[%s198 + $0x18] sm:%s190] %v205
            %v207 = vld [vmem:[%s197 + $0xc8] sm:%s190]
            %208 = vst [vmem:[%s198 + $0x20] sm:%s190] %v207
            %v209 = vld [vmem:[%s197 + $0xd0] sm:%s190]
            %210 = vst [vmem:[%s198 + $0x28] sm:%s190] %v209
          $region136: #{tpu_custom_call.1} parent=130 // loop_footer
            %s196 = sadd.s32 1, %s192
          $region137: #{tpu_custom_call.1} parent=130 // loop_footer_branch
            %191 = sbr.rel target = $region133
          $region138: #{tpu_custom_call.1} parent=130 // loop_exit
            _
        $region131: #{tpu_custom_call.1} parent=122 // pred_fallthru
          _
      $region123: #{tpu_custom_call.1} parent=118 // pred_fallthru
        _
      %235 = vnop
    $region119: #{tpu_custom_call.1} parent=1 // pred_fallthru
      _
    // Predicated region
    $region154: #{tpu_custom_call.1} parent=1 // pred_check
      _
    $region155: #{tpu_custom_call.1} parent=1 // pred_check_branch
      %237 = sbr.rel (0) target = $region157
    $region156: #{tpu_custom_call.1} parent=1 // pred_region
      _
    $region157: #{tpu_custom_call.1} parent=1 // pred_fallthru
      _
    // Predicated region
    $region158: #{tpu_custom_call.1} parent=1 // pred_check
      _
    $region159: #{tpu_custom_call.1} parent=1 // pred_check_branch
      %239 = sbr.rel (0) target = $region161
    $region160: #{tpu_custom_call.1} parent=1 // pred_region
      _
    $region161: #{tpu_custom_call.1} parent=1 // pred_fallthru
      _
    // Predicated region
    $region162: #{tpu_custom_call.1} parent=1 // pred_check
      _
    $region163: #{tpu_custom_call.1} parent=1 // pred_check_branch
      %241 = sbr.rel (0) target = $region165
    $region164: #{tpu_custom_call.1} parent=1 // pred_region
      _
    $region165: #{tpu_custom_call.1} parent=1 // pred_fallthru
      _
    // Predicated region
    $region166: #{tpu_custom_call.1} parent=1 // pred_check
      _
    $region167: #{tpu_custom_call.1} parent=1 // pred_check_branch
      %243 = sbr.rel (0) target = $region169
    $region168: #{tpu_custom_call.1} parent=1 // pred_region
      _
    $region169: #{tpu_custom_call.1} parent=1 // pred_fallthru
      _
    // Predicated region
    $region170: #{tpu_custom_call.1} parent=1 // pred_check
      _
    $region171: #{tpu_custom_call.1} parent=1 // pred_check_branch
      %245 = sbr.rel (0) target = $region173
    $region172: #{tpu_custom_call.1} parent=1 // pred_region
      _
    $region173: #{tpu_custom_call.1} parent=1 // pred_fallthru
      _
    // Predicated region
    $region174: #{tpu_custom_call.1} parent=1 // pred_check
      _
    $region175: #{tpu_custom_call.1} parent=1 // pred_check_branch
      %247 = sbr.rel (0) target = $region177
    $region176: #{tpu_custom_call.1} parent=1 // pred_region
      _
    $region177: #{tpu_custom_call.1} parent=1 // pred_fallthru
      _
    %v248 = vld [vmem:[#allocation2] sm:$0xff]
    %v249 = vld [vmem:[#allocation2 + $0x8] sm:$0xff]
    %v250 = vld [vmem:[#allocation2 + $0x10] sm:$0x1f]
    %v251 = vld [vmem:[#allocation2 + $0x18] sm:$0xff]
    %v252 = vld [vmem:[#allocation2 + $0x20] sm:$0xff]
    %v253 = vld [vmem:[#allocation2 + $0x28] sm:$0x1f]
    %v254 = vld [vmem:[#allocation3] sm:$0xff]
    %v255 = vld [vmem:[#allocation3 + $0x8] sm:$0xff]
    %v256 = vld [vmem:[#allocation3 + $0x10] sm:$0x1f]
    %v257 = vld [vmem:[#allocation3 + $0x18] sm:$0xff]
    %v258 = vld [vmem:[#allocation3 + $0x20] sm:$0xff]
    %v259 = vld [vmem:[#allocation3 + $0x28] sm:$0x1f]
    %v260 = vld [vmem:[#allocation4] sm:$0xff]
    %v261 = vld [vmem:[#allocation4 + $0x8] sm:$0xff]
    %v262 = vld [vmem:[#allocation4 + $0x10] sm:$0x1f]
    %v263 = vld [vmem:[#allocation4 + $0x18] sm:$0xff]
    %v264 = vld [vmem:[#allocation4 + $0x20] sm:$0xff]
    %v265 = vld [vmem:[#allocation4 + $0x28] sm:$0x1f]
    %v266 = vld [vmem:[#allocation5] sm:$0xff]
    %v267 = vld [vmem:[#allocation5 + $0x8] sm:$0xff]
    %v268 = vld [vmem:[#allocation5 + $0x10] sm:$0x1f]
    %v269 = vld [vmem:[#allocation5 + $0x18] sm:$0xff]
    %v270 = vld [vmem:[#allocation5 + $0x20] sm:$0xff]
    %v271 = vld [vmem:[#allocation5 + $0x28] sm:$0x1f]
    %v272 = vsub.f32 %v248, %v254
    %v273 = vsub.f32 %v249, %v255
    %v274 = vsub.f32 %v250, %v256
    %v275 = vsub.f32 %v251, %v257
    %v276 = vsub.f32 %v252, %v258
    %v277 = vsub.f32 %v253, %v259
    %v278 = vand.u32 2147483647, %v272
    %v279 = vand.u32 2147483647, %v273
    %v280 = vand.u32 2147483647, %v274
    %v281 = vand.u32 2147483647, %v275
    %v282 = vand.u32 2147483647, %v276
    %v283 = vand.u32 2147483647, %v277
    %vm284 = vcmask 15360
    %v285 = vsel %vm284, %v278, 0.0
    %v286 = vsel %vm284, %v279, 0.0
    %v287 = vadd.f32 %v285, %v286
    %vm288 = vcmask 12288
    %v289 = vsel %vm288, %v280, 0.0
    %v290 = vadd.f32 %v287, %v289
    %v291 = vsel %vm284, %v281, 0.0
    %v292 = vadd.f32 %v290, %v291
    %v293 = vsel %vm284, %v282, 0.0
    %v294 = vadd.f32 %v292, %v293
    %v295 = vsel %vm288, %v283, 0.0
    %v296 = vadd.f32 %v294, %v295
    %297 = vadd.xlane.f32.xlu0 %v296
    %v298 = vpop.xlane.xlu0 %297
    %v299 = vrot.slane %v298, 4
    %v300 = vadd.f32 %v298, %v299
    %v301 = vrot.slane %v300, 2
    %v302 = vadd.f32 %v300, %v301
    %v303 = vrot.slane %v302, 1
    %v304 = vadd.f32 %v302, %v303
    %s305 = vtos %v304
    %v306 = vmul.f32 %v272, %v272
    %v307 = vmul.f32 %v273, %v273
    %v308 = vmul.f32 %v274, %v274
    %v309 = vmul.f32 %v275, %v275
    %v310 = vmul.f32 %v276, %v276
    %v311 = vmul.f32 %v277, %v277
    %v312 = vsel %vm284, %v306, 0.0
    %313 = vadd.xlane.f32.xlu0 %v312
    %v314 = vpop.xlane.xlu0 %313
    %v315 = vsel %vm284, %v307, 0.0
    %316 = vadd.xlane.f32.xlu0 %v315
    %v317 = vpop.xlane.xlu0 %316
    %v318 = vsel %vm288, %v308, 0.0
    %319 = vadd.xlane.f32.xlu0 %v318
    %v320 = vpop.xlane.xlu0 %319
    %v321 = vsel %vm284, %v309, 0.0
    %322 = vadd.xlane.f32.xlu0 %v321
    %v323 = vpop.xlane.xlu0 %322
    %v324 = vsel %vm284, %v310, 0.0
    %325 = vadd.xlane.f32.xlu0 %v324
    %v326 = vpop.xlane.xlu0 %325
    %v327 = vsel %vm288, %v311, 0.0
    %328 = vadd.xlane.f32.xlu0 %v327
    %v329 = vpop.xlane.xlu0 %328
    %v330 = vrsqrt.pop %v314
    %v331 = vmul.f32 %v314, %v330
    %vm332 = vcmp.eq.f32.partialorder %v314, inf
    %v333 = vsel %vm332, %v314, %v331
    %vm334 = vcmp.eq.f32.partialorder %v314, 0.0
    %v335 = vand.u32 %v314, 2147483648
    %v336 = vsel %vm334, %v335, %v333
    %v337 = vrsqrt.pop %v317
    %v338 = vmul.f32 %v317, %v337
    %vm339 = vcmp.eq.f32.partialorder %v317, inf
    %v340 = vsel %vm339, %v317, %v338
    %vm341 = vcmp.eq.f32.partialorder %v317, 0.0
    %v342 = vand.u32 %v317, 2147483648
    %v343 = vsel %vm341, %v342, %v340
    %v344 = vrsqrt.pop %v320
    %v345 = vmul.f32 %v320, %v344
    %vm346 = vcmp.eq.f32.partialorder %v320, inf
    %v347 = vsel %vm346, %v320, %v345
    %vm348 = vcmp.eq.f32.partialorder %v320, 0.0
    %v349 = vand.u32 %v320, 2147483648
    %v350 = vsel %vm348, %v349, %v347
    %v351 = vrsqrt.pop %v323
    %v352 = vmul.f32 %v323, %v351
    %vm353 = vcmp.eq.f32.partialorder %v323, inf
    %v354 = vsel %vm353, %v323, %v352
    %vm355 = vcmp.eq.f32.partialorder %v323, 0.0
    %v356 = vand.u32 %v323, 2147483648
    %v357 = vsel %vm355, %v356, %v354
    %v358 = vrsqrt.pop %v326
    %v359 = vmul.f32 %v326, %v358
    %vm360 = vcmp.eq.f32.partialorder %v326, inf
    %v361 = vsel %vm360, %v326, %v359
    %vm362 = vcmp.eq.f32.partialorder %v326, 0.0
    %v363 = vand.u32 %v326, 2147483648
    %v364 = vsel %vm362, %v363, %v361
    %v365 = vrsqrt.pop %v329
    %v366 = vmul.f32 %v329, %v365
    %vm367 = vcmp.eq.f32.partialorder %v329, inf
    %v368 = vsel %vm367, %v329, %v366
    %vm369 = vcmp.eq.f32.partialorder %v329, 0.0
    %v370 = vand.u32 %v329, 2147483648
    %v371 = vsel %vm369, %v370, %v368
    %vm372 = vcmask 23552
    %v373 = vsel %vm372, %v260, inf
    %v374 = vsel %vm372, %v261, inf
    %vm375 = vcmask 20480
    %v376 = vsel %vm375, %v262, inf
    %v377 = vmin.f32 %v373, %v376
    %v378 = vmin.f32 %v377, %v374
    %v379 = vrot.slane %v378, 4
    %v380 = vmin.f32 %v378, %v379
    %v381 = vrot.slane %v380, 2
    %v382 = vmin.f32 %v380, %v381
    %v383 = vrot.slane %v382, 1
    %v384 = vmin.f32 %v382, %v383
    %v385 = vsel %vm372, %v263, inf
    %v386 = vsel %vm372, %v264, inf
    %v387 = vsel %vm375, %v265, inf
    %v388 = vmin.f32 %v385, %v387
    %v389 = vmin.f32 %v388, %v386
    %v390 = vrot.slane %v389, 4
    %v391 = vmin.f32 %v389, %v390
    %v392 = vrot.slane %v391, 2
    %v393 = vmin.f32 %v391, %v392
    %v394 = vrot.slane %v393, 1
    %v395 = vmin.f32 %v393, %v394
    %v396 = vsel %vm372, %v260, -inf
    %v397 = vsel %vm372, %v261, -inf
    %v398 = vsel %vm375, %v262, -inf
    %v399 = vmax.f32 %v396, %v398
    %v400 = vmax.f32 %v399, %v397
    %v401 = vrot.slane %v400, 4
    %v402 = vmax.f32 %v400, %v401
    %v403 = vrot.slane %v402, 2
    %v404 = vmax.f32 %v402, %v403
    %v405 = vrot.slane %v404, 1
    %v406 = vmax.f32 %v404, %v405
    %v407 = vsel %vm372, %v263, -inf
    %v408 = vsel %vm372, %v264, -inf
    %v409 = vsel %vm375, %v265, -inf
    %v410 = vmax.f32 %v407, %v409
    %v411 = vmax.f32 %v410, %v408
    %v412 = vrot.slane %v411, 4
    %v413 = vmax.f32 %v411, %v412
    %v414 = vrot.slane %v413, 2
    %v415 = vmax.f32 %v413, %v414
    %v416 = vrot.slane %v415, 1
    %v417 = vmax.f32 %v415, %v416
    %v418 = vsub.f32 %v406, %v384
    %v419 = vsub.f32 %v417, %v395
    %v420 = vsub.f32 %v260, %v384
    %v421 = vsub.f32 %v261, %v384
    %v422 = vsub.f32 %v262, %v384
    %v423 = vsub.f32 %v263, %v395
    %v424 = vsub.f32 %v264, %v395
    %v425 = vsub.f32 %v265, %v395
    %427 = vset.pattern.permute.xlu0 0
    %428 = vperm.xlu0 %427, %v418
    %v429 = vpop.permute.xlu0 %428
    %432 = vset.pattern.permute.xlu0 0
    %433 = vperm.xlu0 %432, %v419
    %v434 = vpop.permute.xlu0 %433
    %v436 = vrcp.pop %v429
    %v437 = vmul.f32 %v420, %v436
    %v438 = vmul.f32 %v421, %v436
    %v439 = vmul.f32 %v422, %v436
    %v440 = vrcp.pop %v434
    %v441 = vmul.f32 %v423, %v440
    %v442 = vmul.f32 %v424, %v440
    %v443 = vmul.f32 %v425, %v440
    %v444 = vsel %vm372, %v437, -inf
    %v445 = vsel %vm372, %v438, -inf
    %v446 = vsel %vm375, %v439, -inf
    %v447 = vmax.f32 %v444, %v446
    %v448 = vmax.f32 %v447, %v445
    %v449 = vrot.slane %v448, 4
    %v450 = vmax.f32 %v448, %v449
    %v451 = vrot.slane %v450, 2
    %v452 = vmax.f32 %v450, %v451
    %v453 = vrot.slane %v452, 1
    %v454 = vmax.f32 %v452, %v453
    %v455 = vsel %vm372, %v441, -inf
    %v456 = vsel %vm372, %v442, -inf
    %v457 = vsel %vm375, %v443, -inf
    %v458 = vmax.f32 %v455, %v457
    %v459 = vmax.f32 %v458, %v456
    %v460 = vrot.slane %v459, 4
    %v461 = vmax.f32 %v459, %v460
    %v462 = vrot.slane %v461, 2
    %v463 = vmax.f32 %v461, %v462
    %v464 = vrot.slane %v463, 1
    %v465 = vmax.f32 %v463, %v464
    %v466 = vsub.f32 %v437, %v454
    %v467 = vsub.f32 %v438, %v454
    %v468 = vsub.f32 %v439, %v454
    %v469 = vsub.f32 %v441, %v465
    %v470 = vsub.f32 %v442, %v465
    %v471 = vsub.f32 %v443, %v465
    %v472 = vsel %vm372, %v266, inf
    %v473 = vsel %vm372, %v267, inf
    %v474 = vsel %vm375, %v268, inf
    %v475 = vmin.f32 %v472, %v474
    %v476 = vmin.f32 %v475, %v473
    %v477 = vrot.slane %v476, 4
    %v478 = vmin.f32 %v476, %v477
    %v479 = vrot.slane %v478, 2
    %v480 = vmin.f32 %v478, %v479
    %v481 = vrot.slane %v480, 1
    %v482 = vmin.f32 %v480, %v481
    %v483 = vsel %vm372, %v269, inf
    %v484 = vsel %vm372, %v270, inf
    %v485 = vsel %vm375, %v271, inf
    %v486 = vmin.f32 %v483, %v485
    %v487 = vmin.f32 %v486, %v484
    %v488 = vrot.slane %v487, 4
    %v489 = vmin.f32 %v487, %v488
    %v490 = vrot.slane %v489, 2
    %v491 = vmin.f32 %v489, %v490
    %v492 = vrot.slane %v491, 1
    %v493 = vmin.f32 %v491, %v492
    %v494 = vsel %vm372, %v266, -inf
    %v495 = vsel %vm372, %v267, -inf
    %v496 = vsel %vm375, %v268, -inf
    %v497 = vmax.f32 %v494, %v496
    %v498 = vmax.f32 %v497, %v495
    %v499 = vrot.slane %v498, 4
    %v500 = vmax.f32 %v498, %v499
    %v501 = vrot.slane %v500, 2
    %v502 = vmax.f32 %v500, %v501
    %v503 = vrot.slane %v502, 1
    %v504 = vmax.f32 %v502, %v503
    %v505 = vsel %vm372, %v269, -inf
    %v506 = vsel %vm372, %v270, -inf
    %v507 = vsel %vm375, %v271, -inf
    %v508 = vmax.f32 %v505, %v507
    %v509 = vmax.f32 %v508, %v506
    %v510 = vrot.slane %v509, 4
    %v511 = vmax.f32 %v509, %v510
    %v512 = vrot.slane %v511, 2
    %v513 = vmax.f32 %v511, %v512
    %v514 = vrot.slane %v513, 1
    %v515 = vmax.f32 %v513, %v514
    %v516 = vsub.f32 %v504, %v482
    %v517 = vsub.f32 %v515, %v493
    %v518 = vsub.f32 %v266, %v482
    %v519 = vsub.f32 %v267, %v482
    %v520 = vsub.f32 %v268, %v482
    %v521 = vsub.f32 %v269, %v493
    %v522 = vsub.f32 %v270, %v493
    %v523 = vsub.f32 %v271, %v493
    %525 = vset.pattern.permute.xlu0 0
    %526 = vperm.xlu0 %525, %v516
    %v527 = vpop.permute.xlu0 %526
    %530 = vset.pattern.permute.xlu0 0
    %531 = vperm.xlu0 %530, %v517
    %v532 = vpop.permute.xlu0 %531
    %v534 = vrcp.pop %v527
    %v535 = vmul.f32 %v518, %v534
    %v536 = vmul.f32 %v519, %v534
    %v537 = vmul.f32 %v520, %v534
    %v538 = vrcp.pop %v532
    %v539 = vmul.f32 %v521, %v538
    %v540 = vmul.f32 %v522, %v538
    %v541 = vmul.f32 %v523, %v538
    %v542 = vsel %vm372, %v535, -inf
    %v543 = vsel %vm372, %v536, -inf
    %v544 = vsel %vm375, %v537, -inf
    %v545 = vmax.f32 %v542, %v544
    %v546 = vmax.f32 %v545, %v543
    %v547 = vrot.slane %v546, 4
    %v548 = vmax.f32 %v546, %v547
    %v549 = vrot.slane %v548, 2
    %v550 = vmax.f32 %v548, %v549
    %v551 = vrot.slane %v550, 1
    %v552 = vmax.f32 %v550, %v551
    %v553 = vsel %vm372, %v539, -inf
    %v554 = vsel %vm372, %v540, -inf
    %v555 = vsel %vm375, %v541, -inf
    %v556 = vmax.f32 %v553, %v555
    %v557 = vmax.f32 %v556, %v554
    %v558 = vrot.slane %v557, 4
    %v559 = vmax.f32 %v557, %v558
    %v560 = vrot.slane %v559, 2
    %v561 = vmax.f32 %v559, %v560
    %v562 = vrot.slane %v561, 1
    %v563 = vmax.f32 %v561, %v562
    %v564 = vsub.f32 %v535, %v552
    %v565 = vsub.f32 %v536, %v552
    %v566 = vsub.f32 %v537, %v552
    %v567 = vsub.f32 %v539, %v563
    %v568 = vsub.f32 %v540, %v563
    %v569 = vsub.f32 %v541, %v563
    %v570 = vsub.f32 %v466, %v564
    %v571 = vsub.f32 %v467, %v565
    %v572 = vsub.f32 %v468, %v566
    %v573 = vsub.f32 %v469, %v567
    %v574 = vsub.f32 %v470, %v568
    %v575 = vsub.f32 %v471, %v569
    %v576 = vmul.f32 %v570, %v570
    %v577 = vmul.f32 %v571, %v571
    %v578 = vmul.f32 %v572, %v572
    %v579 = vmul.f32 %v573, %v573
    %v580 = vmul.f32 %v574, %v574
    %v581 = vmul.f32 %v575, %v575
    %v582 = vsel %vm372, %v576, 0.0
    %v583 = vsel %vm372, %v577, 0.0
    %v584 = vadd.f32 %v582, %v583
    %v585 = vsel %vm375, %v578, 0.0
    %v586 = vadd.f32 %v584, %v585
    %v587 = vsel %vm372, %v579, 0.0
    %v588 = vadd.f32 %v586, %v587
    %v589 = vsel %vm372, %v580, 0.0
    %v590 = vadd.f32 %v588, %v589
    %v591 = vsel %vm375, %v581, 0.0
    %v592 = vadd.f32 %v590, %v591
    %593 = vadd.xlane.f32.xlu0 %v592
    %v594 = vpop.xlane.xlu0 %593
    %v595 = vrot.slane %v594, 4
    %v596 = vadd.f32 %v594, %v595
    %v597 = vrot.slane %v596, 2
    %v598 = vadd.f32 %v596, %v597
    %v599 = vrot.slane %v598, 1
    %v600 = vadd.f32 %v598, %v599
    %s601 = vtos %v600
    %v602 = vmul.f32 %v570, %v418
    %v603 = vmul.f32 %v571, %v418
    %v604 = vmul.f32 %v572, %v418
    %v605 = vmul.f32 %v573, %v419
    %v606 = vmul.f32 %v574, %v419
    %v607 = vmul.f32 %v575, %v419
    %v608 = vmul.f32 %v602, %v602
    %v609 = vmul.f32 %v603, %v603
    %v610 = vmul.f32 %v604, %v604
    %v611 = vmul.f32 %v605, %v605
    %v612 = vmul.f32 %v606, %v606
    %v613 = vmul.f32 %v607, %v607
    %v614 = vsel %vm372, %v608, 0.0
    %615 = vadd.xlane.f32.xlu0 %v614
    %v616 = vpop.xlane.xlu0 %615
    %v617 = vsel %vm372, %v609, 0.0
    %618 = vadd.xlane.f32.xlu0 %v617
    %v619 = vpop.xlane.xlu0 %618
    %v620 = vsel %vm375, %v610, 0.0
    %621 = vadd.xlane.f32.xlu0 %v620
    %v622 = vpop.xlane.xlu0 %621
    %v623 = vsel %vm372, %v611, 0.0
    %624 = vadd.xlane.f32.xlu0 %v623
    %v625 = vpop.xlane.xlu0 %624
    %v626 = vsel %vm372, %v612, 0.0
    %627 = vadd.xlane.f32.xlu0 %v626
    %v628 = vpop.xlane.xlu0 %627
    %v629 = vsel %vm375, %v613, 0.0
    %630 = vadd.xlane.f32.xlu0 %v629
    %v631 = vpop.xlane.xlu0 %630
    %v632 = vrsqrt.pop %v616
    %v633 = vmul.f32 %v616, %v632
    %vm634 = vcmp.eq.f32.partialorder %v616, inf
    %v635 = vsel %vm634, %v616, %v633
    %vm636 = vcmp.eq.f32.partialorder %v616, 0.0
    %v637 = vand.u32 %v616, 2147483648
    %v638 = vsel %vm636, %v637, %v635
    %v639 = vrsqrt.pop %v619
    %v640 = vmul.f32 %v619, %v639
    %vm641 = vcmp.eq.f32.partialorder %v619, inf
    %v642 = vsel %vm641, %v619, %v640
    %vm643 = vcmp.eq.f32.partialorder %v619, 0.0
    %v644 = vand.u32 %v619, 2147483648
    %v645 = vsel %vm643, %v644, %v642
    %v646 = vrsqrt.pop %v622
    %v647 = vmul.f32 %v622, %v646
    %vm648 = vcmp.eq.f32.partialorder %v622, inf
    %v649 = vsel %vm648, %v622, %v647
    %vm650 = vcmp.eq.f32.partialorder %v622, 0.0
    %v651 = vand.u32 %v622, 2147483648
    %v652 = vsel %vm650, %v651, %v649
    %v653 = vrsqrt.pop %v625
    %v654 = vmul.f32 %v625, %v653
    %vm655 = vcmp.eq.f32.partialorder %v625, inf
    %v656 = vsel %vm655, %v625, %v654
    %vm657 = vcmp.eq.f32.partialorder %v625, 0.0
    %v658 = vand.u32 %v625, 2147483648
    %v659 = vsel %vm657, %v658, %v656
    %v660 = vrsqrt.pop %v628
    %v661 = vmul.f32 %v628, %v660
    %vm662 = vcmp.eq.f32.partialorder %v628, inf
    %v663 = vsel %vm662, %v628, %v661
    %vm664 = vcmp.eq.f32.partialorder %v628, 0.0
    %v665 = vand.u32 %v628, 2147483648
    %v666 = vsel %vm664, %v665, %v663
    %v667 = vrsqrt.pop %v631
    %v668 = vmul.f32 %v631, %v667
    %vm669 = vcmp.eq.f32.partialorder %v631, inf
    %v670 = vsel %vm669, %v631, %v668
    %vm671 = vcmp.eq.f32.partialorder %v631, 0.0
    %v672 = vand.u32 %v631, 2147483648
    %v673 = vsel %vm671, %v672, %v670
    %v674 = vld [vmem:[%s4] sm:$0xff]
    %v675 = vld [vmem:[%s4 + $0x8] sm:$0xff]
    %v676 = vrot.slane %v674, 7
    %v677 = vrot.slane %v675, 7
    %v678 = vsub.f32 %v676, %v674
    %v679 = vsub.f32 %v677, %v675
    %v680 = vlaneseq
    %v681 = vshrl.u32 %v680, 7
    %vm682 = vcmp.gt.s32.totalorder %v681, 0
    %v683 = vsel %vm682, %v678, 0.0
    %v684 = vsel %vm682, %v679, 0.0
    %v685 = vmul.f32 %v683, %v683
    %v686 = vmul.f32 %v684, %v684
    %vm687 = vcmask 244736
    %v688 = vsel %vm687, %v685, 0.0
    %v689 = vsel %vm687, %v686, 0.0
    %v690 = vadd.f32 %v688, %v689
    %691 = vadd.xlane.f32.xlu0 %v690
    %v692 = vpop.xlane.xlu0 %691
    %v693 = vrot.slane %v692, 4
    %v694 = vadd.f32 %v692, %v693
    %v695 = vrot.slane %v694, 2
    %v696 = vadd.f32 %v694, %v695
    %v697 = vrot.slane %v696, 1
    %v698 = vadd.f32 %v696, %v697
    %s699 = vtos %v698
    %v700 = vld [vmem:[%s5] sm:$0xff]
    %v701 = vld [vmem:[%s5 + $0x8] sm:$0xff]
    %v702 = vrot.slane %v700, 7
    %v703 = vrot.slane %v701, 7
    %v704 = vsub.f32 %v702, %v700
    %v705 = vsub.f32 %v703, %v701
    %v706 = vsel %vm682, %v704, 0.0
    %v707 = vsel %vm682, %v705, 0.0
    %v708 = vmul.f32 %v706, %v706
    %v709 = vmul.f32 %v707, %v707
    %vm710 = vcmask 80896
    %v711 = vsel %vm710, %v708, 0.0
    %v712 = vsel %vm710, %v709, 0.0
    %v713 = vadd.f32 %v711, %v712
    %714 = vadd.xlane.f32.xlu0 %v713
    %v715 = vpop.xlane.xlu0 %714
    %v716 = vrot.slane %v715, 4
    %v717 = vadd.f32 %v715, %v716
    %v718 = vrot.slane %v717, 2
    %v719 = vadd.f32 %v717, %v718
    %v720 = vrot.slane %v719, 1
    %v721 = vadd.f32 %v719, %v720
    %s722 = vtos %v721
    %s723 = smul.f32 %s305, 0.004464286
    %s724 = smul.f32 %s601, 5.0
    %s725 = smul.f32 %s699, 0.0625
    %s726 = smul.f32 %s722, 0.0625
    %s727 = smul.f32 %s725, 0.1
    %s728 = sadd.f32 %s727, %s726
    %s729 = smul.f32 %s728, 0.0005
    %s730 = sadd.f32 %s723, %s724
    %s731 = sadd.f32 %s730, %s729
    %v732 = vlaneseq
    %v733 = vand.u32 %v732, 127
    %vm734 = vcmp.eq.s32.totalorder %v681, 0
    %vm735 = vcmp.eq.s32.totalorder %v733, 0
    %vm736 = vmand %vm734, %vm735
    %v737 = vstv %s731
    %v738 = vsel %vm736, %v737, 0.0
    %vm739 = vcmp.eq.s32.totalorder %v733, 1
    %vm740 = vmand %vm734, %vm739
    %v741 = vstv %s723
    %v742 = vsel %vm740, %v741, %v738
    %vm743 = vcmp.eq.s32.totalorder %v733, 2
    %vm744 = vmand %vm734, %vm743
    %v745 = vstv %s724
    %v746 = vsel %vm744, %v745, %v742
    %vm747 = vcmp.eq.s32.totalorder %v733, 3
    %vm748 = vmand %vm734, %vm747
    %v749 = vstv %s729
    %v750 = vsel %vm748, %v749, %v746
    %vm751 = vcmp.eq.s32.totalorder %v733, 4
    %vm752 = vmand %vm734, %vm751
    %v753 = vsel %vm752, 0.0, %v750
    %vm754 = vcmp.eq.s32.totalorder %v733, 5
    %vm755 = vmand %vm734, %vm754
    %v756 = vsel %vm755, 0.0, %v753
    %vm757 = vcmp.eq.s32.totalorder %v733, 6
    %vm758 = vmand %vm734, %vm757
    %v759 = vstv %s725
    %v760 = vsel %vm758, %v759, %v756
    %vm761 = vcmp.eq.s32.totalorder %v733, 7
    %vm762 = vmand %vm734, %vm761
    %v763 = vstv %s726
    %v764 = vsel %vm762, %v763, %v760
    %765 = vst [vmem:[#allocation6] sm:$0xff] %v764
    %v772 = vlaneseq
    %v773 = vshrl.u32 %v772, 7
    %v774 = vsub.s32 %v733, %v773
    %v775 = vrot.slane %v336, %v774
    %v776 = vadd.s32 %v733, 4294967288
    %v777 = vlaneseq
    %v778 = vshrl.u32 %v777, 7
    %v779 = vsub.s32 %v776, %v778
    %v780 = vrot.slane %v343, %v779
    %vm781 = vcmask 130112
    %v782 = vsel %vm781, %v780, %v775
    %v783 = vadd.s32 %v733, 4294967280
    %v784 = vlaneseq
    %v785 = vshrl.u32 %v784, 7
    %v786 = vsub.s32 %v783, %v785
    %v787 = vrot.slane %v350, %v786
    %vm788 = vcmask 195712
    %v789 = vsel %vm788, %v787, %v782
    %v790 = vlaneseq
    %v791 = vshrl.u32 %v790, 7
    %v792 = vsub.s32 %v733, %v791
    %v793 = vrot.slane %v357, %v792
    %v794 = vlaneseq
    %v795 = vshrl.u32 %v794, 7
    %v796 = vsub.s32 %v776, %v795
    %v797 = vrot.slane %v364, %v796
    %v798 = vsel %vm781, %v797, %v793
    %v799 = vlaneseq
    %v800 = vshrl.u32 %v799, 7
    %v801 = vsub.s32 %v783, %v800
    %v802 = vrot.slane %v371, %v801
    %v803 = vsel %vm788, %v802, %v798
    %vm804 = vcmask 1041409
    %v805 = vsel %vm804, %v803, %v789
    %vm807 = vcmask 164864
    %808 = vst.msk [vmem:[#allocation6 + $0x1] sm:$0x3] %vm807, %v805
    %v815 = vlaneseq
    %v816 = vshrl.u32 %v815, 7
    %v817 = vsub.s32 %v733, %v816
    %v818 = vrot.slane %v638, %v817
    %v819 = vlaneseq
    %v820 = vshrl.u32 %v819, 7
    %v821 = vsub.s32 %v776, %v820
    %v822 = vrot.slane %v645, %v821
    %v823 = vsel %vm781, %v822, %v818
    %v824 = vlaneseq
    %v825 = vshrl.u32 %v824, 7
    %v826 = vsub.s32 %v783, %v825
    %v827 = vrot.slane %v652, %v826
    %v828 = vsel %vm788, %v827, %v823
    %v829 = vlaneseq
    %v830 = vshrl.u32 %v829, 7
    %v831 = vsub.s32 %v733, %v830
    %v832 = vrot.slane %v659, %v831
    %v833 = vlaneseq
    %v834 = vshrl.u32 %v833, 7
    %v835 = vsub.s32 %v776, %v834
    %v836 = vrot.slane %v666, %v835
    %v837 = vsel %vm781, %v836, %v832
    %v838 = vlaneseq
    %v839 = vshrl.u32 %v838, 7
    %v840 = vsub.s32 %v783, %v839
    %v841 = vrot.slane %v673, %v840
    %v842 = vsel %vm788, %v841, %v837
    %v843 = vsel %vm804, %v842, %v828
    %845 = vst.msk [vmem:[#allocation6 + $0x3] sm:$0x3] %vm807, %v843
    // Predicated region
    $region178: #{tpu_custom_call.1} parent=1 // pred_check
      _
    $region179: #{tpu_custom_call.1} parent=1 // pred_check_branch
      %847 = sbr.rel (0) target = $region181
    $region180: #{tpu_custom_call.1} parent=1 // pred_region
      %s849 = ssub.s32 128, 128
      %850 = vsyncadd [#allocation7], %s849
      %s852 = sshll.u32 [#allocation6], 4
      %s853 = int_to_ptr.vmem [resolvable:$true] %s852
      %855 = dma.vmem_to_hbm [thread:$0]  %s853, 128, %s6, [#allocation7]
    $region181: #{tpu_custom_call.1} parent=1 // pred_fallthru
      _
    // Predicated region
    $region182: #{tpu_custom_call.1} parent=1 // pred_check
      _
    $region183: #{tpu_custom_call.1} parent=1 // pred_check_branch
      %857 = sbr.rel (0) target = $region185
    $region184: #{tpu_custom_call.1} parent=1 // pred_region
      %858 = dma.done [#allocation7], 128
    $region185: #{tpu_custom_call.1} parent=1 // pred_fallthru
      _
    %859 = vsyncpa [#allocation7], 1

</llo_original>
